<compile_context>
chip_gen: v7x
topology: tpu7x:2x2x1
jax: 0.10.0
libtpu: 0.0.40
codegen_flags: <defaults>
</compile_context>

<pallas_src>
import functools
import math

import jax
import jax.numpy as jnp
from jax.experimental import pallas as pl
from jax.experimental.pallas import tpu as pltpu

_LOG_SQRT_2PI = 0.5 * math.log(2.0 * math.pi)
_SHIFT_STEPS = 6  # recurrence shift so the asymptotic series is accurate in f32


def _lgamma_digamma(x):
    """(lgamma(x), digamma(x)) for x > 0, sharing the shift recurrence.

    lgamma shift uses log of the running product (one EUP log instead of K);
    the product stays far within f32 range for the O(1..1e3) concentration
    sums seen here.
    """
    z = x
    prod = z
    rsum = 1.0 / z
    for _ in range(_SHIFT_STEPS - 1):
        z = z + 1.0
        prod = prod * z
        rsum = rsum + 1.0 / z
    z = z + 1.0                      # z = x + _SHIFT_STEPS
    log_z = jnp.log(z)
    inv = 1.0 / z
    inv2 = inv * inv
    lg_series = inv * (1.0 / 12.0
                       + inv2 * (-1.0 / 360.0
                                 + inv2 * (1.0 / 1260.0
                                           + inv2 * (-1.0 / 1680.0))))
    lg = (z - 0.5) * log_z - z + _LOG_SQRT_2PI + lg_series - jnp.log(prod)
    dg = (log_z - 0.5 * inv
          - inv2 * (1.0 / 12.0 - inv2 * (1.0 / 120.0 - inv2 * (1.0 / 252.0)))
          - rsum)
    return lg, dg


def _digamma(x):
    """digamma(x) for x > 0 via recurrence + asymptotic series (f32)."""
    z = x
    rsum = 1.0 / z
    for _ in range(_SHIFT_STEPS - 1):
        z = z + 1.0
        rsum = rsum + 1.0 / z
    z = z + 1.0
    inv = 1.0 / z
    inv2 = inv * inv
    return (jnp.log(z) - 0.5 * inv
            - inv2 * (1.0 / 12.0 - inv2 * (1.0 / 120.0 - inv2 * (1.0 / 252.0)))
            - rsum)


def _evd_loss_kernel(labels_ref, alpha_ref, out_ref, *, num_classes, annealing):
    alpha = alpha_ref[...].astype(jnp.float32)              # (C, TN)
    labels = labels_ref[...]                                 # (1, TN) int32
    c, tn = alpha.shape

    # one-hot y from integer labels (C on the sublane axis, N on lanes)
    class_ids = jax.lax.broadcasted_iota(jnp.int32, (c, tn), 0)
    y = (class_ids == labels).astype(jnp.float32)            # (C, TN)
    one_minus_y = 1.0 - y

    # shared transcendentals over the (C, TN) tile
    lg_alpha, dg_alpha = _lgamma_digamma(alpha)

    s = jnp.sum(alpha, axis=0, keepdims=True)                 # (1, TN)
    dg_s = _digamma(s)

    # Bayes-risk (digamma) loss: sum((digamma(S) - digamma(alpha)) * y)
    evd = dg_s - jnp.sum(dg_alpha * y, axis=0, keepdims=True)

    # KL( Dir(alpha_tilde) || Dir(1) ) with alpha_tilde = y + (1-y)*alpha.
    # Uses alpha_tilde == 1 at the label and == alpha elsewhere, so no new
    # transcendentals over the (C, TN) tile are needed.
    alpha_at_label = jnp.sum(alpha * y, axis=0, keepdims=True)
    s_a = s - alpha_at_label + 1.0                            # sum(alpha_tilde)
    lg_sa, dg_sa = _lgamma_digamma(s_a)

    lgamma_beta = jnp.float32(math.lgamma(float(num_classes)))
    kl = (lg_sa - lgamma_beta
          - jnp.sum(one_minus_y * lg_alpha, axis=0, keepdims=True)
          + jnp.sum(one_minus_y * (alpha - 1.0) * (dg_alpha - dg_sa),
                    axis=0, keepdims=True))

    out_ref[...] = evd + jnp.float32(annealing) * kl


def _round_up(x, m):
    return ((x + m - 1) // m) * m


def evd_loss(alpha, labels, t=0, *, T=50000, num_classes=5, reduction='none',
             tile_n=512):
    """EVDLoss('edl_digamma', one_hot=True, mode='concentration') forward.

    NOTE: `t` must be a concrete Python scalar (it is baked into the kernel,
    mirroring the PyTorch module's `min(1.0, float(t)/T)`).
    """
    n, c = alpha.shape
    assert c == num_classes
    annealing = min(1.0, float(t) / float(T))

    # lane tile: multiple of 128, capped at tile_n; pad N to a tile multiple
    lane_tile = min(tile_n, _round_up(n, 128))
    n_pad = _round_up(n, lane_tile)

    alpha_t = jnp.asarray(alpha, jnp.float32).T               # (C, N)
    labels2d = labels.astype(jnp.int32).reshape(1, n)
    if n_pad != n:
        # pad with valid (alpha=1, label=0) rows; they are sliced off below
        alpha_t = jnp.pad(alpha_t, ((0, 0), (0, n_pad - n)),
                          constant_values=1.0)
        labels2d = jnp.pad(labels2d, ((0, 0), (0, n_pad - n)))

    kernel = functools.partial(_evd_loss_kernel, num_classes=num_classes,
                               annealing=annealing)

    out = pl.pallas_call(
        kernel,
        out_shape=jax.ShapeDtypeStruct((1, n_pad), jnp.float32),
        grid_spec=pltpu.PrefetchScalarGridSpec(
            num_scalar_prefetch=0,
            grid=(n_pad // lane_tile,),
            in_specs=[
                pl.BlockSpec((1, lane_tile), lambda i: (0, i)),   # labels
                pl.BlockSpec((c, lane_tile), lambda i: (0, i)),   # alpha (C,N)
            ],
            out_specs=pl.BlockSpec((1, lane_tile), lambda i: (0, i)),
        ),
        compiler_params=pltpu.CompilerParams(
            dimension_semantics=("parallel",)),
    )(labels2d, alpha_t)

    loss = out[0, :n]
    if reduction == 'none':
        return loss
    elif reduction == 'mean':
        return loss.mean()
    elif reduction == 'sum':
        return loss.sum()
    raise ValueError(f'Unknown reduction {reduction}')


def _reference_evd_loss(alpha, labels, t, T=50000, num_classes=5):
    """Pure-JAX reference mirroring the PyTorch module."""
    from jax.scipy.special import gammaln, digamma
    y = jnp.eye(num_classes, dtype=jnp.float32)[labels]
    annealing = min(1.0, float(t) / float(T))
    s = alpha.sum(axis=1, keepdims=True)
    evd = jnp.sum((digamma(s) - digamma(alpha)) * y, axis=1)
    a_t = y + (1.0 - y) * alpha
    s_a = a_t.sum(axis=1)
    kl = (gammaln(s_a) - gammaln(jnp.float32(num_classes))
          - jnp.sum(gammaln(a_t), axis=1)
          + jnp.sum((a_t - 1.0) * (digamma(a_t) - digamma(s_a[:, None])),
                    axis=1))
    return evd + annealing * kl


if __name__ == "__main__":
    key = jax.random.PRNGKey(0)
    k_alpha, k_labels = jax.random.split(key)

    N, C = 1000, 5          # N not a multiple of 128 -> exercises padding path
    T = 50000

    # Strictly positive Dirichlet concentration parameters in [0.5, 5.5].
    alpha = jax.random.uniform(k_alpha, (N, C), dtype=jnp.float32,
                               minval=0.5, maxval=5.5)
    labels = jax.random.randint(k_labels, (N,), 0, C, dtype=jnp.int32)

    ok = True
    for t in (0, 25000):    # annealing = 0.0 and 0.5 (KL term exercised)
        loss = evd_loss(alpha, labels, t=t, T=T, num_classes=C,
                        reduction='none')
        loss = jax.block_until_ready(loss)
        ref = _reference_evd_loss(alpha, labels, t, T=T, num_classes=C)
        assert loss.shape == (N,)
        err = float(jnp.max(jnp.abs(loss - ref)))
        ok = ok and bool(jnp.allclose(loss, ref, atol=2e-3, rtol=2e-3))
        assert ok, err

    print("KERNEL_OK")
</pallas_src>

<mosaic_0001>
module attributes {stable_mosaic.version = 11 : i64} {
  func.func @_evd_loss_kernel(%arg0: i32, %arg1: memref<1x512xi32, #tpu.memory_space<vmem>>, %arg2: memref<5x512xf32, #tpu.memory_space<vmem>>, %arg3: memref<1x512xf32, #tpu.memory_space<vmem>>) attributes {dimension_semantics = [#tpu.dimension_semantics<parallel>], iteration_bounds = array<i64: 2>, scalar_prefetch = 0 : i64, scratch_operands = 0 : i64, tpu.core_type = #tpu.core_type<tc>, window_params = [{transform_indices = @transform_0, window_bounds = array<i64: 1, 512>}, {transform_indices = @transform_1, window_bounds = array<i64: 5, 512>}, {transform_indices = @transform_2, window_bounds = array<i64: 1, 512>}]} {
    %c0 = arith.constant 0 : index
    %c0_0 = arith.constant 0 : index
    %0 = vector.load %arg2[%c0, %c0_0] : memref<5x512xf32, #tpu.memory_space<vmem>>, vector<5x512xf32>
    %c0_1 = arith.constant 0 : index
    %c0_2 = arith.constant 0 : index
    %1 = vector.load %arg1[%c0_1, %c0_2] : memref<1x512xi32, #tpu.memory_space<vmem>>, vector<1x512xi32>
    %2 = tpu.iota {dimensions = array<i32: 0>} : vector<5x512xi32>
    %3 = vector.broadcast %1 : vector<1x512xi32> to vector<5x512xi32>
    %4 = arith.cmpi eq, %2, %3 : vector<5x512xi32>
    %5 = arith.extui %4 : vector<5x512xi1> to vector<5x512xi32>
    %6 = arith.sitofp %5 : vector<5x512xi32> to vector<5x512xf32>
    %cst = arith.constant 1.000000e+00 : f32
    %7 = vector.broadcast %cst : f32 to vector<5x512xf32>
    %8 = arith.subf %7, %6 : vector<5x512xf32>
    %cst_3 = arith.constant 1.000000e+00 : f32
    %9 = vector.broadcast %cst_3 : f32 to vector<5x512xf32>
    %10 = arith.divf %9, %0 : vector<5x512xf32>
    %cst_4 = arith.constant 1.000000e+00 : f32
    %11 = vector.broadcast %cst_4 : f32 to vector<5x512xf32>
    %12 = arith.addf %0, %11 : vector<5x512xf32>
    %13 = arith.mulf %0, %12 : vector<5x512xf32>
    %cst_5 = arith.constant 1.000000e+00 : f32
    %14 = vector.broadcast %cst_5 : f32 to vector<5x512xf32>
    %15 = arith.divf %14, %12 : vector<5x512xf32>
    %16 = arith.addf %10, %15 : vector<5x512xf32>
    %cst_6 = arith.constant 1.000000e+00 : f32
    %17 = vector.broadcast %cst_6 : f32 to vector<5x512xf32>
    %18 = arith.addf %12, %17 : vector<5x512xf32>
    %19 = arith.mulf %13, %18 : vector<5x512xf32>
    %cst_7 = arith.constant 1.000000e+00 : f32
    %20 = vector.broadcast %cst_7 : f32 to vector<5x512xf32>
    %21 = arith.divf %20, %18 : vector<5x512xf32>
    %22 = arith.addf %16, %21 : vector<5x512xf32>
    %cst_8 = arith.constant 1.000000e+00 : f32
    %23 = vector.broadcast %cst_8 : f32 to vector<5x512xf32>
    %24 = arith.addf %18, %23 : vector<5x512xf32>
    %25 = arith.mulf %19, %24 : vector<5x512xf32>
    %cst_9 = arith.constant 1.000000e+00 : f32
    %26 = vector.broadcast %cst_9 : f32 to vector<5x512xf32>
    %27 = arith.divf %26, %24 : vector<5x512xf32>
    %28 = arith.addf %22, %27 : vector<5x512xf32>
    %cst_10 = arith.constant 1.000000e+00 : f32
    %29 = vector.broadcast %cst_10 : f32 to vector<5x512xf32>
    %30 = arith.addf %24, %29 : vector<5x512xf32>
    %31 = arith.mulf %25, %30 : vector<5x512xf32>
    %cst_11 = arith.constant 1.000000e+00 : f32
    %32 = vector.broadcast %cst_11 : f32 to vector<5x512xf32>
    %33 = arith.divf %32, %30 : vector<5x512xf32>
    %34 = arith.addf %28, %33 : vector<5x512xf32>
    %cst_12 = arith.constant 1.000000e+00 : f32
    %35 = vector.broadcast %cst_12 : f32 to vector<5x512xf32>
    %36 = arith.addf %30, %35 : vector<5x512xf32>
    %37 = arith.mulf %31, %36 : vector<5x512xf32>
    %cst_13 = arith.constant 1.000000e+00 : f32
    %38 = vector.broadcast %cst_13 : f32 to vector<5x512xf32>
    %39 = arith.divf %38, %36 : vector<5x512xf32>
    %40 = arith.addf %34, %39 : vector<5x512xf32>
    %cst_14 = arith.constant 1.000000e+00 : f32
    %41 = vector.broadcast %cst_14 : f32 to vector<5x512xf32>
    %42 = arith.addf %36, %41 : vector<5x512xf32>
    %43 = math.log %42 : vector<5x512xf32>
    %cst_15 = arith.constant 1.000000e+00 : f32
    %44 = vector.broadcast %cst_15 : f32 to vector<5x512xf32>
    %45 = arith.divf %44, %42 : vector<5x512xf32>
    %46 = arith.mulf %45, %45 : vector<5x512xf32>
    %cst_16 = arith.constant -5.95238118E-4 : f32
    %47 = vector.broadcast %cst_16 : f32 to vector<5x512xf32>
    %48 = arith.mulf %46, %47 : vector<5x512xf32>
    %cst_17 = arith.constant 7.93650805E-4 : f32
    %49 = vector.broadcast %cst_17 : f32 to vector<5x512xf32>
    %50 = arith.addf %49, %48 : vector<5x512xf32>
    %51 = arith.mulf %46, %50 : vector<5x512xf32>
    %cst_18 = arith.constant -0.00277777785 : f32
    %52 = vector.broadcast %cst_18 : f32 to vector<5x512xf32>
    %53 = arith.addf %52, %51 : vector<5x512xf32>
    %54 = arith.mulf %46, %53 : vector<5x512xf32>
    %cst_19 = arith.constant 0.0833333358 : f32
    %55 = vector.broadcast %cst_19 : f32 to vector<5x512xf32>
    %56 = arith.addf %55, %54 : vector<5x512xf32>
    %57 = arith.mulf %45, %56 : vector<5x512xf32>
    %cst_20 = arith.constant 5.000000e-01 : f32
    %58 = vector.broadcast %cst_20 : f32 to vector<5x512xf32>
    %59 = arith.subf %42, %58 : vector<5x512xf32>
    %60 = arith.mulf %59, %43 : vector<5x512xf32>
    %61 = arith.subf %60, %42 : vector<5x512xf32>
    %cst_21 = arith.constant 0.918938517 : f32
    %62 = vector.broadcast %cst_21 : f32 to vector<5x512xf32>
    %63 = arith.addf %61, %62 : vector<5x512xf32>
    %64 = arith.addf %63, %57 : vector<5x512xf32>
    %65 = math.log %37 : vector<5x512xf32>
    %66 = arith.subf %64, %65 : vector<5x512xf32>
    %cst_22 = arith.constant 5.000000e-01 : f32
    %67 = vector.broadcast %cst_22 : f32 to vector<5x512xf32>
    %68 = arith.mulf %67, %45 : vector<5x512xf32>
    %69 = arith.subf %43, %68 : vector<5x512xf32>
    %cst_23 = arith.constant 0.0039682542 : f32
    %70 = vector.broadcast %cst_23 : f32 to vector<5x512xf32>
    %71 = arith.mulf %46, %70 : vector<5x512xf32>
    %cst_24 = arith.constant 0.00833333377 : f32
    %72 = vector.broadcast %cst_24 : f32 to vector<5x512xf32>
    %73 = arith.subf %72, %71 : vector<5x512xf32>
    %74 = arith.mulf %46, %73 : vector<5x512xf32>
    %cst_25 = arith.constant 0.0833333358 : f32
    %75 = vector.broadcast %cst_25 : f32 to vector<5x512xf32>
    %76 = arith.subf %75, %74 : vector<5x512xf32>
    %77 = arith.mulf %46, %76 : vector<5x512xf32>
    %78 = arith.subf %69, %77 : vector<5x512xf32>
    %79 = arith.subf %78, %40 : vector<5x512xf32>
    %cst_26 = arith.constant dense<0.000000e+00> : vector<512xf32>
    %80 = vector.multi_reduction <add>, %0, %cst_26 [0] : vector<5x512xf32> to vector<512xf32>
    %81 = vector.shape_cast %80 : vector<512xf32> to vector<1x512xf32>
    %cst_27 = arith.constant 1.000000e+00 : f32
    %82 = vector.broadcast %cst_27 : f32 to vector<1x512xf32>
    %83 = arith.divf %82, %81 : vector<1x512xf32>
    %cst_28 = arith.constant 1.000000e+00 : f32
    %84 = vector.broadcast %cst_28 : f32 to vector<1x512xf32>
    %85 = arith.addf %81, %84 : vector<1x512xf32>
    %cst_29 = arith.constant 1.000000e+00 : f32
    %86 = vector.broadcast %cst_29 : f32 to vector<1x512xf32>
    %87 = arith.divf %86, %85 : vector<1x512xf32>
    %88 = arith.addf %83, %87 : vector<1x512xf32>
    %cst_30 = arith.constant 1.000000e+00 : f32
    %89 = vector.broadcast %cst_30 : f32 to vector<1x512xf32>
    %90 = arith.addf %85, %89 : vector<1x512xf32>
    %cst_31 = arith.constant 1.000000e+00 : f32
    %91 = vector.broadcast %cst_31 : f32 to vector<1x512xf32>
    %92 = arith.divf %91, %90 : vector<1x512xf32>
    %93 = arith.addf %88, %92 : vector<1x512xf32>
    %cst_32 = arith.constant 1.000000e+00 : f32
    %94 = vector.broadcast %cst_32 : f32 to vector<1x512xf32>
    %95 = arith.addf %90, %94 : vector<1x512xf32>
    %cst_33 = arith.constant 1.000000e+00 : f32
    %96 = vector.broadcast %cst_33 : f32 to vector<1x512xf32>
    %97 = arith.divf %96, %95 : vector<1x512xf32>
    %98 = arith.addf %93, %97 : vector<1x512xf32>
    %cst_34 = arith.constant 1.000000e+00 : f32
    %99 = vector.broadcast %cst_34 : f32 to vector<1x512xf32>
    %100 = arith.addf %95, %99 : vector<1x512xf32>
    %cst_35 = arith.constant 1.000000e+00 : f32
    %101 = vector.broadcast %cst_35 : f32 to vector<1x512xf32>
    %102 = arith.divf %101, %100 : vector<1x512xf32>
    %103 = arith.addf %98, %102 : vector<1x512xf32>
    %cst_36 = arith.constant 1.000000e+00 : f32
    %104 = vector.broadcast %cst_36 : f32 to vector<1x512xf32>
    %105 = arith.addf %100, %104 : vector<1x512xf32>
    %cst_37 = arith.constant 1.000000e+00 : f32
    %106 = vector.broadcast %cst_37 : f32 to vector<1x512xf32>
    %107 = arith.divf %106, %105 : vector<1x512xf32>
    %108 = arith.addf %103, %107 : vector<1x512xf32>
    %cst_38 = arith.constant 1.000000e+00 : f32
    %109 = vector.broadcast %cst_38 : f32 to vector<1x512xf32>
    %110 = arith.addf %105, %109 : vector<1x512xf32>
    %cst_39 = arith.constant 1.000000e+00 : f32
    %111 = vector.broadcast %cst_39 : f32 to vector<1x512xf32>
    %112 = arith.divf %111, %110 : vector<1x512xf32>
    %113 = arith.mulf %112, %112 : vector<1x512xf32>
    %114 = math.log %110 : vector<1x512xf32>
    %cst_40 = arith.constant 5.000000e-01 : f32
    %115 = vector.broadcast %cst_40 : f32 to vector<1x512xf32>
    %116 = arith.mulf %115, %112 : vector<1x512xf32>
    %117 = arith.subf %114, %116 : vector<1x512xf32>
    %cst_41 = arith.constant 0.0039682542 : f32
    %118 = vector.broadcast %cst_41 : f32 to vector<1x512xf32>
    %119 = arith.mulf %113, %118 : vector<1x512xf32>
    %cst_42 = arith.constant 0.00833333377 : f32
    %120 = vector.broadcast %cst_42 : f32 to vector<1x512xf32>
    %121 = arith.subf %120, %119 : vector<1x512xf32>
    %122 = arith.mulf %113, %121 : vector<1x512xf32>
    %cst_43 = arith.constant 0.0833333358 : f32
    %123 = vector.broadcast %cst_43 : f32 to vector<1x512xf32>
    %124 = arith.subf %123, %122 : vector<1x512xf32>
    %125 = arith.mulf %113, %124 : vector<1x512xf32>
    %126 = arith.subf %117, %125 : vector<1x512xf32>
    %127 = arith.subf %126, %108 : vector<1x512xf32>
    %128 = arith.mulf %79, %6 : vector<5x512xf32>
    %cst_44 = arith.constant dense<0.000000e+00> : vector<512xf32>
    %129 = vector.multi_reduction <add>, %128, %cst_44 [0] : vector<5x512xf32> to vector<512xf32>
    %130 = vector.shape_cast %129 : vector<512xf32> to vector<1x512xf32>
    %131 = arith.subf %127, %130 : vector<1x512xf32>
    %132 = arith.mulf %0, %6 : vector<5x512xf32>
    %cst_45 = arith.constant dense<0.000000e+00> : vector<512xf32>
    %133 = vector.multi_reduction <add>, %132, %cst_45 [0] : vector<5x512xf32> to vector<512xf32>
    %134 = vector.shape_cast %133 : vector<512xf32> to vector<1x512xf32>
    %135 = arith.subf %81, %134 : vector<1x512xf32>
    %cst_46 = arith.constant 1.000000e+00 : f32
    %136 = vector.broadcast %cst_46 : f32 to vector<1x512xf32>
    %137 = arith.addf %135, %136 : vector<1x512xf32>
    %cst_47 = arith.constant 1.000000e+00 : f32
    %138 = vector.broadcast %cst_47 : f32 to vector<1x512xf32>
    %139 = arith.divf %138, %137 : vector<1x512xf32>
    %cst_48 = arith.constant 1.000000e+00 : f32
    %140 = vector.broadcast %cst_48 : f32 to vector<1x512xf32>
    %141 = arith.addf %137, %140 : vector<1x512xf32>
    %142 = arith.mulf %137, %141 : vector<1x512xf32>
    %cst_49 = arith.constant 1.000000e+00 : f32
    %143 = vector.broadcast %cst_49 : f32 to vector<1x512xf32>
    %144 = arith.divf %143, %141 : vector<1x512xf32>
    %145 = arith.addf %139, %144 : vector<1x512xf32>
    %cst_50 = arith.constant 1.000000e+00 : f32
    %146 = vector.broadcast %cst_50 : f32 to vector<1x512xf32>
    %147 = arith.addf %141, %146 : vector<1x512xf32>
    %148 = arith.mulf %142, %147 : vector<1x512xf32>
    %cst_51 = arith.constant 1.000000e+00 : f32
    %149 = vector.broadcast %cst_51 : f32 to vector<1x512xf32>
    %150 = arith.divf %149, %147 : vector<1x512xf32>
    %151 = arith.addf %145, %150 : vector<1x512xf32>
    %cst_52 = arith.constant 1.000000e+00 : f32
    %152 = vector.broadcast %cst_52 : f32 to vector<1x512xf32>
    %153 = arith.addf %147, %152 : vector<1x512xf32>
    %154 = arith.mulf %148, %153 : vector<1x512xf32>
    %cst_53 = arith.constant 1.000000e+00 : f32
    %155 = vector.broadcast %cst_53 : f32 to vector<1x512xf32>
    %156 = arith.divf %155, %153 : vector<1x512xf32>
    %157 = arith.addf %151, %156 : vector<1x512xf32>
    %cst_54 = arith.constant 1.000000e+00 : f32
    %158 = vector.broadcast %cst_54 : f32 to vector<1x512xf32>
    %159 = arith.addf %153, %158 : vector<1x512xf32>
    %160 = arith.mulf %154, %159 : vector<1x512xf32>
    %cst_55 = arith.constant 1.000000e+00 : f32
    %161 = vector.broadcast %cst_55 : f32 to vector<1x512xf32>
    %162 = arith.divf %161, %159 : vector<1x512xf32>
    %163 = arith.addf %157, %162 : vector<1x512xf32>
    %cst_56 = arith.constant 1.000000e+00 : f32
    %164 = vector.broadcast %cst_56 : f32 to vector<1x512xf32>
    %165 = arith.addf %159, %164 : vector<1x512xf32>
    %166 = arith.mulf %160, %165 : vector<1x512xf32>
    %cst_57 = arith.constant 1.000000e+00 : f32
    %167 = vector.broadcast %cst_57 : f32 to vector<1x512xf32>
    %168 = arith.divf %167, %165 : vector<1x512xf32>
    %169 = arith.addf %163, %168 : vector<1x512xf32>
    %cst_58 = arith.constant 1.000000e+00 : f32
    %170 = vector.broadcast %cst_58 : f32 to vector<1x512xf32>
    %171 = arith.addf %165, %170 : vector<1x512xf32>
    %172 = math.log %171 : vector<1x512xf32>
    %cst_59 = arith.constant 1.000000e+00 : f32
    %173 = vector.broadcast %cst_59 : f32 to vector<1x512xf32>
    %174 = arith.divf %173, %171 : vector<1x512xf32>
    %175 = arith.mulf %174, %174 : vector<1x512xf32>
    %cst_60 = arith.constant -5.95238118E-4 : f32
    %176 = vector.broadcast %cst_60 : f32 to vector<1x512xf32>
    %177 = arith.mulf %175, %176 : vector<1x512xf32>
    %cst_61 = arith.constant 7.93650805E-4 : f32
    %178 = vector.broadcast %cst_61 : f32 to vector<1x512xf32>
    %179 = arith.addf %178, %177 : vector<1x512xf32>
    %180 = arith.mulf %175, %179 : vector<1x512xf32>
    %cst_62 = arith.constant -0.00277777785 : f32
    %181 = vector.broadcast %cst_62 : f32 to vector<1x512xf32>
    %182 = arith.addf %181, %180 : vector<1x512xf32>
    %183 = arith.mulf %175, %182 : vector<1x512xf32>
    %cst_63 = arith.constant 0.0833333358 : f32
    %184 = vector.broadcast %cst_63 : f32 to vector<1x512xf32>
    %185 = arith.addf %184, %183 : vector<1x512xf32>
    %186 = arith.mulf %174, %185 : vector<1x512xf32>
    %cst_64 = arith.constant 5.000000e-01 : f32
    %187 = vector.broadcast %cst_64 : f32 to vector<1x512xf32>
    %188 = arith.subf %171, %187 : vector<1x512xf32>
    %189 = arith.mulf %188, %172 : vector<1x512xf32>
    %190 = arith.subf %189, %171 : vector<1x512xf32>
    %cst_65 = arith.constant 0.918938517 : f32
    %191 = vector.broadcast %cst_65 : f32 to vector<1x512xf32>
    %192 = arith.addf %190, %191 : vector<1x512xf32>
    %193 = arith.addf %192, %186 : vector<1x512xf32>
    %194 = math.log %166 : vector<1x512xf32>
    %195 = arith.subf %193, %194 : vector<1x512xf32>
    %cst_66 = arith.constant 5.000000e-01 : f32
    %196 = vector.broadcast %cst_66 : f32 to vector<1x512xf32>
    %197 = arith.mulf %196, %174 : vector<1x512xf32>
    %198 = arith.subf %172, %197 : vector<1x512xf32>
    %cst_67 = arith.constant 0.0039682542 : f32
    %199 = vector.broadcast %cst_67 : f32 to vector<1x512xf32>
    %200 = arith.mulf %175, %199 : vector<1x512xf32>
    %cst_68 = arith.constant 0.00833333377 : f32
    %201 = vector.broadcast %cst_68 : f32 to vector<1x512xf32>
    %202 = arith.subf %201, %200 : vector<1x512xf32>
    %203 = arith.mulf %175, %202 : vector<1x512xf32>
    %cst_69 = arith.constant 0.0833333358 : f32
    %204 = vector.broadcast %cst_69 : f32 to vector<1x512xf32>
    %205 = arith.subf %204, %203 : vector<1x512xf32>
    %206 = arith.mulf %175, %205 : vector<1x512xf32>
    %207 = arith.subf %198, %206 : vector<1x512xf32>
    %208 = arith.subf %207, %169 : vector<1x512xf32>
    %cst_70 = arith.constant 3.17805386 : f32
    %209 = vector.broadcast %cst_70 : f32 to vector<1x512xf32>
    %210 = arith.subf %195, %209 : vector<1x512xf32>
    %211 = arith.mulf %8, %66 : vector<5x512xf32>
    %cst_71 = arith.constant dense<0.000000e+00> : vector<512xf32>
    %212 = vector.multi_reduction <add>, %211, %cst_71 [0] : vector<5x512xf32> to vector<512xf32>
    %213 = vector.shape_cast %212 : vector<512xf32> to vector<1x512xf32>
    %214 = arith.subf %210, %213 : vector<1x512xf32>
    %cst_72 = arith.constant 1.000000e+00 : f32
    %215 = vector.broadcast %cst_72 : f32 to vector<5x512xf32>
    %216 = arith.subf %0, %215 : vector<5x512xf32>
    %217 = arith.mulf %8, %216 : vector<5x512xf32>
    %218 = vector.broadcast %208 : vector<1x512xf32> to vector<5x512xf32>
    %219 = arith.subf %79, %218 : vector<5x512xf32>
    %220 = arith.mulf %217, %219 : vector<5x512xf32>
    %cst_73 = arith.constant dense<0.000000e+00> : vector<512xf32>
    %221 = vector.multi_reduction <add>, %220, %cst_73 [0] : vector<5x512xf32> to vector<512xf32>
    %222 = vector.shape_cast %221 : vector<512xf32> to vector<1x512xf32>
    %223 = arith.addf %214, %222 : vector<1x512xf32>
    %cst_74 = arith.constant 0.000000e+00 : f32
    %224 = vector.broadcast %cst_74 : f32 to vector<1x512xf32>
    %225 = arith.mulf %224, %223 : vector<1x512xf32>
    %226 = arith.addf %131, %225 : vector<1x512xf32>
    %c0_75 = arith.constant 0 : index
    %c0_76 = arith.constant 0 : index
    %227 = vector.load %arg3[%c0_75, %c0_76] : memref<1x512xf32, #tpu.memory_space<vmem>>, vector<1x512xf32>
    tpu.vector_store %arg3[%c0_75, %c0_76], %226 {strides = array<i32>} : memref<1x512xf32, #tpu.memory_space<vmem>>, vector<1x512xf32>,
    return
  }
  func.func @transform_0(%arg0: i32) -> (i32, i32) {
    %c0_i32 = arith.constant 0 : i32
    %c0_i32_0 = arith.constant 0 : i32
    return %c0_i32, %arg0 : i32, i32
  }
  func.func @transform_1(%arg0: i32) -> (i32, i32) {
    %c0_i32 = arith.constant 0 : i32
    %c0_i32_0 = arith.constant 0 : i32
    return %c0_i32, %arg0 : i32, i32
  }
  func.func @transform_2(%arg0: i32) -> (i32, i32) {
    %c0_i32 = arith.constant 0 : i32
    %c0_i32_0 = arith.constant 0 : i32
    return %c0_i32, %arg0 : i32, i32
  }
}

</mosaic_0001>

<llo_original>
// kernel: tpu_custom_call.1
$region0: #{tpu_custom_call.1}
  #allocation0 [shape = 'u32[]', space=smem, size = 0x4, offset = 0x4, fixed_abs, tag = 'smem constant byte address 0x4 - core index']
  #allocation1 [shape = 'u32[144,128]{1,0:T(1,128)}', space=vmem, size = 0x12000, scoped, tag = 'internal scratch']
  %s0 = inlined_call_operand.hbm [shape: s32[1,1024], index: 0, kind: input, shape index: {}]
  %s1 = inlined_call_operand.hbm [shape: f32[5,1024], index: 1, kind: input, shape index: {}]
  %s2 = inlined_call_operand.hbm [shape: f32[1,1024], index: 2, kind: output, shape index: {}]
  %s3 = sld [smem:[#allocation0]]
  $region49: #{tpu_custom_call.1} parent=0
    _
  %s5 = ssub.s32 1, %s3
  %s6 = scalar_select 0, %s5, %s3
  $region1: #{tpu_custom_call.1} parent=0
    #allocation2 [shape = 'u8[4096]{0}', space=vmem, size = 0x1000, scoped, tag = 'input window, operand 0']
    #allocation3 [shape = 's32[2]{0}', space=sflag, size = 0x8, scoped, tag = 'scoped memory for tpu_custom_call.1']
    #allocation4 [shape = 's32[2]{0}', space=sflag, size = 0x8, scoped, tag = 'scoped memory for tpu_custom_call.1']
    #allocation5 [shape = 'u8[32768]{0}', space=vmem, size = 0x8000, scoped, tag = 'input window, operand 1']
    #allocation6 [shape = 's32[2]{0}', space=sflag, size = 0x8, scoped, tag = 'scoped memory for tpu_custom_call.1']
    #allocation7 [shape = 'u8[4096]{0}', space=vmem, size = 0x1000, scoped, tag = 'output window, operand 0']
    %7 = vsyncpa [#allocation3], 0
    %s8 = scalar_lea.sflag [#allocation3], 1
    %9 = vsyncpa %s8, 0
    %10 = vsyncpa [#allocation6], 0
    %s11 = scalar_lea.sflag [#allocation6], 1
    %12 = vsyncpa %s11, 0
    %13 = vsyncpa [#allocation4], 0
    %s14 = scalar_lea.sflag [#allocation4], 1
    %15 = vsyncpa %s14, 0
    loop: start=0, step=1, limit=4
    $region2: #{tpu_custom_call.1} parent=1 // loop_pre_header
      _
    $region3: #{tpu_custom_call.1} parent=1 // loop_header
      %s17 = sphi 0, %s21
      %p18 = scmp.ge.s32.totalorder %s17, 4
      %s27 = sphi 0, %s29
      %s30 = sphi 0, %s27
      %s31 = sphi 0, %s30
      %s47 = sphi 0, %s31
      %s53 = sphi 0, %s55
      %s56 = sphi 0, %s53
      %s57 = sphi 0, %s56
      %s73 = sphi 0, %s57
      %s79 = sphi 0, %s81
      %s82 = sphi 0, %s79
      %s83 = sphi 0, %s82
      %s99 = sphi 0, %s83
    $region4: #{tpu_custom_call.1} parent=1 // loop_header_branch
      %20 = sbr.rel (%p18) target = $region8
    $region5: #{tpu_custom_call.1} parent=1 // loop_body
      %s22 = ssub.s32 %s17, 1
      %s23 = ssub.s32 %s17, 2
      %s24 = sadd.s32 %s17, 1
      %s25 = ssub.s32 %s17, %s24
      %p26 = scmp.eq.s32.totalorder %s25, 0
      %s28 = sadd.s32 %s27, 1
      %s29 = scalar_select %p26, %s27, %s28
      %p32 = pneg %p26
      %p33 = scmp.eq.s32.totalorder %s17, 1
      %p34 = por %p32, %p33
      %p35 = scmp.ne.s32.totalorder %s27, %s30
      %p36 = scmp.eq.s32.totalorder %s17, 0
      %p37 = por %p35, %p36
      %p38 = scmp.ne.s32.totalorder %s27, %s30
      %p39 = scmp.eq.s32.totalorder %s22, 1
      %p40 = por %p38, %p39
      %p41 = scmp.ne.s32.totalorder %s30, %s31
      %p42 = scmp.eq.s32.totalorder %s22, 0
      %p43 = por %p41, %p42
      %p44 = scmp.ne.s32.totalorder %s30, %s31
      %p45 = scmp.eq.s32.totalorder %s23, 1
      %p46 = por %p44, %p45
      %p48 = scmp.ne.s32.totalorder %s31, %s47
      %p49 = scmp.eq.s32.totalorder %s23, 0
      %p50 = por %p48, %p49
      %s51 = ssub.s32 %s17, %s24
      %p52 = scmp.eq.s32.totalorder %s51, 0
      %s54 = sadd.s32 %s53, 1
      %s55 = scalar_select %p52, %s53, %s54
      %p58 = pneg %p52
      %p59 = scmp.eq.s32.totalorder %s17, 1
      %p60 = por %p58, %p59
      %p61 = scmp.ne.s32.totalorder %s53, %s56
      %p62 = scmp.eq.s32.totalorder %s17, 0
      %p63 = por %p61, %p62
      %p64 = scmp.ne.s32.totalorder %s53, %s56
      %p65 = scmp.eq.s32.totalorder %s22, 1
      %p66 = por %p64, %p65
      %p67 = scmp.ne.s32.totalorder %s56, %s57
      %p68 = scmp.eq.s32.totalorder %s22, 0
      %p69 = por %p67, %p68
      %p70 = scmp.ne.s32.totalorder %s56, %s57
      %p71 = scmp.eq.s32.totalorder %s23, 1
      %p72 = por %p70, %p71
      %p74 = scmp.ne.s32.totalorder %s57, %s73
      %p75 = scmp.eq.s32.totalorder %s23, 0
      %p76 = por %p74, %p75
      %s77 = ssub.s32 %s17, %s24
      %p78 = scmp.eq.s32.totalorder %s77, 0
      %s80 = sadd.s32 %s79, 1
      %s81 = scalar_select %p78, %s79, %s80
      %p84 = pneg %p78
      %p85 = scmp.eq.s32.totalorder %s17, 1
      %p86 = por %p84, %p85
      %p87 = scmp.ne.s32.totalorder %s79, %s82
      %p88 = scmp.eq.s32.totalorder %s17, 0
      %p89 = por %p87, %p88
      %p90 = scmp.ne.s32.totalorder %s79, %s82
      %p91 = scmp.eq.s32.totalorder %s22, 1
      %p92 = por %p90, %p91
      %p93 = scmp.ne.s32.totalorder %s82, %s83
      %p94 = scmp.eq.s32.totalorder %s22, 0
      %p95 = por %p93, %p94
      %p96 = scmp.ne.s32.totalorder %s82, %s83
      %p97 = scmp.eq.s32.totalorder %s23, 1
      %p98 = por %p96, %p97
      %p100 = scmp.ne.s32.totalorder %s83, %s99
      %p101 = scmp.eq.s32.totalorder %s23, 0
      %p102 = por %p100, %p101
      %p103 = scmp.le.s32.totalorder 1, %s17
      %p104 = scmp.lt.s32.totalorder %s17, 3
      %p105 = pnand %p103, %p104
      %p106 = pneg %p105
      // Predicated region
      $region9: #{tpu_custom_call.1} parent=5 // pred_check
        _
      $region10: #{tpu_custom_call.1} parent=5 // pred_check_branch
        %108 = sbr.rel (%p105) target = $region12
      $region11: #{tpu_custom_call.1} parent=5 // pred_region
        %s109 = ssub.s32 %s17, 1
      $region12: #{tpu_custom_call.1} parent=5 // pred_fallthru
        _
      %p110 = scmp.lt.s32.totalorder %s17, 2
      // Predicated region
      $region13: #{tpu_custom_call.1} parent=5 // pred_check
        %p111 = pneg %p110
      $region14: #{tpu_custom_call.1} parent=5 // pred_check_branch
        %113 = sbr.rel (%p111) target = $region16
      $region15: #{tpu_custom_call.1} parent=5 // pred_region
        // Predicated region
        $region17: #{tpu_custom_call.1} parent=15 // pred_check
          %p114 = pneg %p37
        $region18: #{tpu_custom_call.1} parent=15 // pred_check_branch
          %116 = sbr.rel (%p114) target = $region20
        $region19: #{tpu_custom_call.1} parent=15 // pred_region
          %s117 = sand.u32 %s27, 1
          %s118 = scalar_lea.sflag [#allocation3], %s117
          %s119 = sand.u32 %s27, 1
          %s120 = smul.addr %s119, 4
          %s121 = scalar_lea.vmem [#allocation2], %s120
          %s122 = smul.u32 4, %s17
          %s124 = ssub.s32 64, 64
          %125 = vsyncadd %s118, %s124
          %s126 = smul.addr %s122, 16
          %s127 = scalar_lea.hbm %s0, %s126
          %s129 = sshll.u32 %s121, 4
          %s130 = int_to_ptr.vmem [resolvable:$true] %s129
          %132 = dma.hbm_to_vmem [thread:$0]  %s127, 64, %s130, %s118
        $region20: #{tpu_custom_call.1} parent=15 // pred_fallthru
          _
        // Predicated region
        $region21: #{tpu_custom_call.1} parent=15 // pred_check
          %p133 = pneg %p63
        $region22: #{tpu_custom_call.1} parent=15 // pred_check_branch
          %135 = sbr.rel (%p133) target = $region24
        $region23: #{tpu_custom_call.1} parent=15 // pred_region
          %s136 = sand.u32 %s53, 1
          %s137 = scalar_lea.sflag [#allocation6], %s136
          %s138 = sand.u32 %s53, 1
          %s139 = smul.addr %s138, 32
          %s140 = scalar_lea.vmem [#allocation5], %s139
          %s141 = smul.u32 4, %s17
          %s143 = ssub.s32 512, 512
          %144 = vsyncadd %s137, %s143
          %s145 = smul.addr %s141, 128
          %s146 = scalar_lea.hbm %s1, %s145
          %s148 = sshll.u32 %s140, 4
          %s149 = int_to_ptr.vmem [resolvable:$true] %s148
          %151 = dma.hbm_to_vmem [thread:$0]  %s146, 512, %s149, %s137
        $region24: #{tpu_custom_call.1} parent=15 // pred_fallthru
          _
      $region16: #{tpu_custom_call.1} parent=5 // pred_fallthru
        _
      %p152 = scmp.le.s32.totalorder 1, %s17
      %p153 = scmp.lt.s32.totalorder %s17, 3
      %p154 = pnand %p152, %p153
      %p155 = pneg %p154
      // Predicated region
      $region25: #{tpu_custom_call.1} parent=5 // pred_check
        _
      $region26: #{tpu_custom_call.1} parent=5 // pred_check_branch
        %157 = sbr.rel (%p154) target = $region28
      $region27: #{tpu_custom_call.1} parent=5 // pred_region
        %s158 = ssub.s32 %s17, 1
        %s159 = sand.u32 %s30, 1
        %s160 = scalar_lea.sflag [#allocation3], %s159
        %s161 = sand.u32 %s30, 1
        %s162 = smul.addr %s161, 4
        %s163 = scalar_lea.vmem [#allocation2], %s162
        // Predicated region
        $region29: #{tpu_custom_call.1} parent=27 // pred_check
          %p164 = pneg %p43
        $region30: #{tpu_custom_call.1} parent=27 // pred_check_branch
          %166 = sbr.rel (%p164) target = $region32
        $region31: #{tpu_custom_call.1} parent=27 // pred_region
          %167 = dma.done %s160, 64
        $region32: #{tpu_custom_call.1} parent=27 // pred_fallthru
          _
        %s168 = sand.u32 %s56, 1
        %s169 = scalar_lea.sflag [#allocation6], %s168
        %s170 = sand.u32 %s56, 1
        %s171 = smul.addr %s170, 32
        %s172 = scalar_lea.vmem [#allocation5], %s171
        // Predicated region
        $region33: #{tpu_custom_call.1} parent=27 // pred_check
          %p173 = pneg %p69
        $region34: #{tpu_custom_call.1} parent=27 // pred_check_branch
          %175 = sbr.rel (%p173) target = $region36
        $region35: #{tpu_custom_call.1} parent=27 // pred_region
          %176 = dma.done %s169, 512
        $region36: #{tpu_custom_call.1} parent=27 // pred_fallthru
          _
        %s177 = sand.u32 %s30, 1
        %s178 = scalar_lea.sflag [#allocation3], %s177
        %s179 = sand.u32 %s30, 1
        %s180 = smul.addr %s179, 4
        %s181 = scalar_lea.vmem [#allocation2], %s180
        %p182 = pneg %p43
        %p183 = pneg %p40
        %s184 = sand.u32 %s56, 1
        %s185 = scalar_lea.sflag [#allocation6], %s184
        %s186 = sand.u32 %s56, 1
        %s187 = smul.addr %s186, 32
        %s188 = scalar_lea.vmem [#allocation5], %s187
        %p189 = pneg %p69
        %p190 = pneg %p66
        %p191 = pneg %p95
        %p192 = pneg %p92
        %s193 = sand.u32 %s82, 1
        %s194 = scalar_lea.sflag [#allocation4], %s193
        %s195 = sand.u32 %s82, 1
        %s196 = smul.addr %s195, 4
        %s197 = scalar_lea.vmem [#allocation7], %s196
        %s198 = smul.u32 4, %s22
        %s199 = smul.u32 4, %s22
        %s200 = smul.u32 4, %s22
        %v201 = vld [vmem:[%s172] sm:$0x1f]
        %v202 = vld [vmem:[%s172 + $0x8] sm:$0x1f]
        %v203 = vld [vmem:[%s172 + $0x10] sm:$0x1f]
        %v204 = vld [vmem:[%s172 + $0x18] sm:$0x1f]
        %v205 = vld [vmem:[%s163] sm:$0xf]
        %v206 = vlaneseq
        %v207 = vshrl.u32 %v206, 7
        %v208 = vlaneseq
        %v209 = vshrl.u32 %v208, 7
        %v210 = vsub.s32 0, %v209
        %v211 = vrot.slane %v205, %v210
        %v212 = vlaneseq
        %v213 = vshrl.u32 %v212, 7
        %v214 = vsub.s32 1, %v213
        %v215 = vrot.slane %v205, %v214
        %v216 = vlaneseq
        %v217 = vshrl.u32 %v216, 7
        %v218 = vsub.s32 2, %v217
        %v219 = vrot.slane %v205, %v218
        %v220 = vlaneseq
        %v221 = vshrl.u32 %v220, 7
        %v222 = vsub.s32 3, %v221
        %v223 = vrot.slane %v205, %v222
        %vm224 = vcmp.eq.s32.totalorder %v207, %v211
        %vm225 = vcmp.eq.s32.totalorder %v207, %v215
        %vm226 = vcmp.eq.s32.totalorder %v207, %v219
        %vm227 = vcmp.eq.s32.totalorder %v207, %v223
        %v228 = vsel %vm224, 1, 0
        %v229 = vsel %vm225, 1, 0
        %v230 = vsel %vm226, 1, 0
        %v231 = vsel %vm227, 1, 0
        %v232 = vcvt.s32.f32 %v228
        %v233 = vcvt.s32.f32 %v229
        %v234 = vcvt.s32.f32 %v230
        %v235 = vcvt.s32.f32 %v231
        %v236 = vsub.f32 1.0, %v232
        %v237 = vsub.f32 1.0, %v233
        %v238 = vsub.f32 1.0, %v234
        %v239 = vsub.f32 1.0, %v235
        %v240 = vrcp.pop %v201
        %v241 = vmul.f32 1.0, %v240
        %v242 = vrcp.pop %v202
        %v243 = vmul.f32 1.0, %v242
        %v244 = vrcp.pop %v203
        %v245 = vmul.f32 1.0, %v244
        %v246 = vrcp.pop %v204
        %v247 = vmul.f32 1.0, %v246
        %v248 = vadd.f32 %v201, 1.0
        %v249 = vadd.f32 %v202, 1.0
        %v250 = vadd.f32 %v203, 1.0
        %v251 = vadd.f32 %v204, 1.0
        %v252 = vmul.f32 %v201, %v248
        %v253 = vmul.f32 %v202, %v249
        %v254 = vmul.f32 %v203, %v250
        %v255 = vmul.f32 %v204, %v251
        %v256 = vrcp.pop %v248
        %v257 = vmul.f32 1.0, %v256
        %v258 = vrcp.pop %v249
        %v259 = vmul.f32 1.0, %v258
        %v260 = vrcp.pop %v250
        %v261 = vmul.f32 1.0, %v260
        %v262 = vrcp.pop %v251
        %v263 = vmul.f32 1.0, %v262
        %v264 = vadd.f32 %v241, %v257
        %v265 = vadd.f32 %v243, %v259
        %v266 = vadd.f32 %v245, %v261
        %v267 = vadd.f32 %v247, %v263
        %v268 = vadd.f32 %v248, 1.0
        %v269 = vadd.f32 %v249, 1.0
        %v270 = vadd.f32 %v250, 1.0
        %v271 = vadd.f32 %v251, 1.0
        %v272 = vmul.f32 %v252, %v268
        %v273 = vmul.f32 %v253, %v269
        %v274 = vmul.f32 %v254, %v270
        %v275 = vmul.f32 %v255, %v271
        %v276 = vrcp.pop %v268
        %v277 = vmul.f32 1.0, %v276
        %v278 = vrcp.pop %v269
        %v279 = vmul.f32 1.0, %v278
        %v280 = vrcp.pop %v270
        %v281 = vmul.f32 1.0, %v280
        %v282 = vrcp.pop %v271
        %v283 = vmul.f32 1.0, %v282
        %v284 = vadd.f32 %v264, %v277
        %v285 = vadd.f32 %v265, %v279
        %v286 = vadd.f32 %v266, %v281
        %v287 = vadd.f32 %v267, %v283
        %v288 = vadd.f32 %v268, 1.0
        %v289 = vadd.f32 %v269, 1.0
        %v290 = vadd.f32 %v270, 1.0
        %v291 = vadd.f32 %v271, 1.0
        %v292 = vmul.f32 %v272, %v288
        %v293 = vmul.f32 %v273, %v289
        %v294 = vmul.f32 %v274, %v290
        %v295 = vmul.f32 %v275, %v291
        %v296 = vrcp.pop %v288
        %v297 = vmul.f32 1.0, %v296
        %v298 = vrcp.pop %v289
        %v299 = vmul.f32 1.0, %v298
        %v300 = vrcp.pop %v290
        %v301 = vmul.f32 1.0, %v300
        %v302 = vrcp.pop %v291
        %v303 = vmul.f32 1.0, %v302
        %v304 = vadd.f32 %v284, %v297
        %v305 = vadd.f32 %v285, %v299
        %v306 = vadd.f32 %v286, %v301
        %v307 = vadd.f32 %v287, %v303
        %v308 = vadd.f32 %v288, 1.0
        %v309 = vadd.f32 %v289, 1.0
        %v310 = vadd.f32 %v290, 1.0
        %v311 = vadd.f32 %v291, 1.0
        %v312 = vmul.f32 %v292, %v308
        %v313 = vmul.f32 %v293, %v309
        %v314 = vmul.f32 %v294, %v310
        %v315 = vmul.f32 %v295, %v311
        %v316 = vrcp.pop %v308
        %v317 = vmul.f32 1.0, %v316
        %v318 = vrcp.pop %v309
        %v319 = vmul.f32 1.0, %v318
        %v320 = vrcp.pop %v310
        %v321 = vmul.f32 1.0, %v320
        %v322 = vrcp.pop %v311
        %v323 = vmul.f32 1.0, %v322
        %v324 = vadd.f32 %v304, %v317
        %v325 = vadd.f32 %v305, %v319
        %v326 = vadd.f32 %v306, %v321
        %v327 = vadd.f32 %v307, %v323
        %v328 = vadd.f32 %v308, 1.0
        %v329 = vadd.f32 %v309, 1.0
        %v330 = vadd.f32 %v310, 1.0
        %v331 = vadd.f32 %v311, 1.0
        %v332 = vmul.f32 %v312, %v328
        %v333 = vmul.f32 %v313, %v329
        %v334 = vmul.f32 %v314, %v330
        %v335 = vmul.f32 %v315, %v331
        %v336 = vrcp.pop %v328
        %v337 = vmul.f32 1.0, %v336
        %v338 = vrcp.pop %v329
        %v339 = vmul.f32 1.0, %v338
        %v340 = vrcp.pop %v330
        %v341 = vmul.f32 1.0, %v340
        %v342 = vrcp.pop %v331
        %v343 = vmul.f32 1.0, %v342
        %v344 = vadd.f32 %v324, %v337
        %v345 = vadd.f32 %v325, %v339
        %v346 = vadd.f32 %v326, %v341
        %v347 = vadd.f32 %v327, %v343
        %v348 = vadd.f32 %v328, 1.0
        %v349 = vadd.f32 %v329, 1.0
        %v350 = vadd.f32 %v330, 1.0
        %v351 = vadd.f32 %v331, 1.0
        %v352 = vlog2.pop %v348
        %v353 = vmul.f32 %v352, 0.6931472
        %v354 = vlog2.pop %v349
        %v355 = vmul.f32 %v354, 0.6931472
        %v356 = vlog2.pop %v350
        %v357 = vmul.f32 %v356, 0.6931472
        %v358 = vlog2.pop %v351
        %v359 = vmul.f32 %v358, 0.6931472
        %v360 = vrcp.pop %v348
        %v361 = vmul.f32 1.0, %v360
        %v362 = vrcp.pop %v349
        %v363 = vmul.f32 1.0, %v362
        %v364 = vrcp.pop %v350
        %v365 = vmul.f32 1.0, %v364
        %v366 = vrcp.pop %v351
        %v367 = vmul.f32 1.0, %v366
        %v368 = vmul.f32 %v361, %v361
        %v369 = vmul.f32 %v363, %v363
        %v370 = vmul.f32 %v365, %v365
        %v371 = vmul.f32 %v367, %v367
        %v372 = vmul.f32 %v368, -0.0005952381
        %v373 = vmul.f32 %v369, -0.0005952381
        %v374 = vmul.f32 %v370, -0.0005952381
        %v375 = vmul.f32 %v371, -0.0005952381
        %v376 = vadd.f32 %v372, 0.0007936508
        %v377 = vadd.f32 %v373, 0.0007936508
        %v378 = vadd.f32 %v374, 0.0007936508
        %v379 = vadd.f32 %v375, 0.0007936508
        %v380 = vmul.f32 %v368, %v376
        %v381 = vmul.f32 %v369, %v377
        %v382 = vmul.f32 %v370, %v378
        %v383 = vmul.f32 %v371, %v379
        %v384 = vadd.f32 %v380, -0.0027777778
        %v385 = vadd.f32 %v381, -0.0027777778
        %v386 = vadd.f32 %v382, -0.0027777778
        %v387 = vadd.f32 %v383, -0.0027777778
        %v388 = vmul.f32 %v368, %v384
        %v389 = vmul.f32 %v369, %v385
        %v390 = vmul.f32 %v370, %v386
        %v391 = vmul.f32 %v371, %v387
        %v392 = vadd.f32 %v388, 0.083333336
        %v393 = vadd.f32 %v389, 0.083333336
        %v394 = vadd.f32 %v390, 0.083333336
        %v395 = vadd.f32 %v391, 0.083333336
        %v396 = vmul.f32 %v361, %v392
        %v397 = vmul.f32 %v363, %v393
        %v398 = vmul.f32 %v365, %v394
        %v399 = vmul.f32 %v367, %v395
        %v400 = vsub.f32 %v348, 0.5
        %v401 = vsub.f32 %v349, 0.5
        %v402 = vsub.f32 %v350, 0.5
        %v403 = vsub.f32 %v351, 0.5
        %v404 = vmul.f32 %v400, %v353
        %v405 = vmul.f32 %v401, %v355
        %v406 = vmul.f32 %v402, %v357
        %v407 = vmul.f32 %v403, %v359
        %v408 = vsub.f32 %v404, %v348
        %v409 = vsub.f32 %v405, %v349
        %v410 = vsub.f32 %v406, %v350
        %v411 = vsub.f32 %v407, %v351
        %v412 = vadd.f32 %v408, 0.9189385
        %v413 = vadd.f32 %v409, 0.9189385
        %v414 = vadd.f32 %v410, 0.9189385
        %v415 = vadd.f32 %v411, 0.9189385
        %v416 = vadd.f32 %v412, %v396
        %v417 = vadd.f32 %v413, %v397
        %v418 = vadd.f32 %v414, %v398
        %v419 = vadd.f32 %v415, %v399
        %v420 = vlog2.pop %v332
        %v421 = vmul.f32 %v420, 0.6931472
        %v422 = vlog2.pop %v333
        %v423 = vmul.f32 %v422, 0.6931472
        %v424 = vlog2.pop %v334
        %v425 = vmul.f32 %v424, 0.6931472
        %v426 = vlog2.pop %v335
        %v427 = vmul.f32 %v426, 0.6931472
        %v428 = vsub.f32 %v416, %v421
        %v429 = vsub.f32 %v417, %v423
        %v430 = vsub.f32 %v418, %v425
        %v431 = vsub.f32 %v419, %v427
        %v432 = vmul.f32 %v361, 0.5
        %v433 = vmul.f32 %v363, 0.5
        %v434 = vmul.f32 %v365, 0.5
        %v435 = vmul.f32 %v367, 0.5
        %v436 = vsub.f32 %v353, %v432
        %v437 = vsub.f32 %v355, %v433
        %v438 = vsub.f32 %v357, %v434
        %v439 = vsub.f32 %v359, %v435
        %v440 = vmul.f32 %v368, 0.003968254
        %v441 = vmul.f32 %v369, 0.003968254
        %v442 = vmul.f32 %v370, 0.003968254
        %v443 = vmul.f32 %v371, 0.003968254
        %v444 = vsub.f32 0.008333334, %v440
        %v445 = vsub.f32 0.008333334, %v441
        %v446 = vsub.f32 0.008333334, %v442
        %v447 = vsub.f32 0.008333334, %v443
        %v448 = vmul.f32 %v368, %v444
        %v449 = vmul.f32 %v369, %v445
        %v450 = vmul.f32 %v370, %v446
        %v451 = vmul.f32 %v371, %v447
        %v452 = vsub.f32 0.083333336, %v448
        %v453 = vsub.f32 0.083333336, %v449
        %v454 = vsub.f32 0.083333336, %v450
        %v455 = vsub.f32 0.083333336, %v451
        %v456 = vmul.f32 %v368, %v452
        %v457 = vmul.f32 %v369, %v453
        %v458 = vmul.f32 %v370, %v454
        %v459 = vmul.f32 %v371, %v455
        %v460 = vsub.f32 %v436, %v456
        %v461 = vsub.f32 %v437, %v457
        %v462 = vsub.f32 %v438, %v458
        %v463 = vsub.f32 %v439, %v459
        %v464 = vsub.f32 %v460, %v344
        %v465 = vsub.f32 %v461, %v345
        %v466 = vsub.f32 %v462, %v346
        %v467 = vsub.f32 %v463, %v347
        %vm468 = vcmask 1044480
        %v469 = vsel %vm468, %v201, 0.0
        %v470 = vrot.slane %v469, 4
        %v471 = vadd.f32 %v469, %v470
        %v472 = vrot.slane %v471, 2
        %v473 = vadd.f32 %v471, %v472
        %v474 = vrot.slane %v473, 1
        %v475 = vadd.f32 %v473, %v474
        %v476 = vsel %vm468, %v202, 0.0
        %v477 = vrot.slane %v476, 4
        %v478 = vadd.f32 %v476, %v477
        %v479 = vrot.slane %v478, 2
        %v480 = vadd.f32 %v478, %v479
        %v481 = vrot.slane %v480, 1
        %v482 = vadd.f32 %v480, %v481
        %v483 = vsel %vm468, %v203, 0.0
        %v484 = vrot.slane %v483, 4
        %v485 = vadd.f32 %v483, %v484
        %v486 = vrot.slane %v485, 2
        %v487 = vadd.f32 %v485, %v486
        %v488 = vrot.slane %v487, 1
        %v489 = vadd.f32 %v487, %v488
        %v490 = vsel %vm468, %v204, 0.0
        %v491 = vrot.slane %v490, 4
        %v492 = vadd.f32 %v490, %v491
        %v493 = vrot.slane %v492, 2
        %v494 = vadd.f32 %v492, %v493
        %v495 = vrot.slane %v494, 1
        %v496 = vadd.f32 %v494, %v495
        %v497 = vrcp.pop %v475
        %v498 = vmul.f32 1.0, %v497
        %v499 = vrcp.pop %v482
        %v500 = vmul.f32 1.0, %v499
        %v501 = vrcp.pop %v489
        %v502 = vmul.f32 1.0, %v501
        %v503 = vrcp.pop %v496
        %v504 = vmul.f32 1.0, %v503
        %v505 = vadd.f32 %v475, 1.0
        %v506 = vadd.f32 %v482, 1.0
        %v507 = vadd.f32 %v489, 1.0
        %v508 = vadd.f32 %v496, 1.0
        %v509 = vrcp.pop %v505
        %v510 = vmul.f32 1.0, %v509
        %v511 = vrcp.pop %v506
        %v512 = vmul.f32 1.0, %v511
        %v513 = vrcp.pop %v507
        %v514 = vmul.f32 1.0, %v513
        %v515 = vrcp.pop %v508
        %v516 = vmul.f32 1.0, %v515
        %v517 = vadd.f32 %v498, %v510
        %v518 = vadd.f32 %v500, %v512
        %v519 = vadd.f32 %v502, %v514
        %v520 = vadd.f32 %v504, %v516
        %v521 = vadd.f32 %v505, 1.0
        %v522 = vadd.f32 %v506, 1.0
        %v523 = vadd.f32 %v507, 1.0
        %v524 = vadd.f32 %v508, 1.0
        %v525 = vrcp.pop %v521
        %v526 = vmul.f32 1.0, %v525
        %v527 = vrcp.pop %v522
        %v528 = vmul.f32 1.0, %v527
        %v529 = vrcp.pop %v523
        %v530 = vmul.f32 1.0, %v529
        %v531 = vrcp.pop %v524
        %v532 = vmul.f32 1.0, %v531
        %v533 = vadd.f32 %v517, %v526
        %v534 = vadd.f32 %v518, %v528
        %v535 = vadd.f32 %v519, %v530
        %v536 = vadd.f32 %v520, %v532
        %v537 = vadd.f32 %v521, 1.0
        %v538 = vadd.f32 %v522, 1.0
        %v539 = vadd.f32 %v523, 1.0
        %v540 = vadd.f32 %v524, 1.0
        %v541 = vrcp.pop %v537
        %v542 = vmul.f32 1.0, %v541
        %v543 = vrcp.pop %v538
        %v544 = vmul.f32 1.0, %v543
        %v545 = vrcp.pop %v539
        %v546 = vmul.f32 1.0, %v545
        %v547 = vrcp.pop %v540
        %v548 = vmul.f32 1.0, %v547
        %v549 = vadd.f32 %v533, %v542
        %v550 = vadd.f32 %v534, %v544
        %v551 = vadd.f32 %v535, %v546
        %v552 = vadd.f32 %v536, %v548
        %v553 = vadd.f32 %v537, 1.0
        %v554 = vadd.f32 %v538, 1.0
        %v555 = vadd.f32 %v539, 1.0
        %v556 = vadd.f32 %v540, 1.0
        %v557 = vrcp.pop %v553
        %v558 = vmul.f32 1.0, %v557
        %v559 = vrcp.pop %v554
        %v560 = vmul.f32 1.0, %v559
        %v561 = vrcp.pop %v555
        %v562 = vmul.f32 1.0, %v561
        %v563 = vrcp.pop %v556
        %v564 = vmul.f32 1.0, %v563
        %v565 = vadd.f32 %v549, %v558
        %v566 = vadd.f32 %v550, %v560
        %v567 = vadd.f32 %v551, %v562
        %v568 = vadd.f32 %v552, %v564
        %v569 = vadd.f32 %v553, 1.0
        %v570 = vadd.f32 %v554, 1.0
        %v571 = vadd.f32 %v555, 1.0
        %v572 = vadd.f32 %v556, 1.0
        %v573 = vrcp.pop %v569
        %v574 = vmul.f32 1.0, %v573
        %v575 = vrcp.pop %v570
        %v576 = vmul.f32 1.0, %v575
        %v577 = vrcp.pop %v571
        %v578 = vmul.f32 1.0, %v577
        %v579 = vrcp.pop %v572
        %v580 = vmul.f32 1.0, %v579
        %v581 = vadd.f32 %v565, %v574
        %v582 = vadd.f32 %v566, %v576
        %v583 = vadd.f32 %v567, %v578
        %v584 = vadd.f32 %v568, %v580
        %v585 = vadd.f32 %v569, 1.0
        %v586 = vadd.f32 %v570, 1.0
        %v587 = vadd.f32 %v571, 1.0
        %v588 = vadd.f32 %v572, 1.0
        %v589 = vrcp.pop %v585
        %v590 = vmul.f32 1.0, %v589
        %v591 = vrcp.pop %v586
        %v592 = vmul.f32 1.0, %v591
        %v593 = vrcp.pop %v587
        %v594 = vmul.f32 1.0, %v593
        %v595 = vrcp.pop %v588
        %v596 = vmul.f32 1.0, %v595
        %v597 = vmul.f32 %v590, %v590
        %v598 = vmul.f32 %v592, %v592
        %v599 = vmul.f32 %v594, %v594
        %v600 = vmul.f32 %v596, %v596
        %v601 = vlog2.pop %v585
        %v602 = vmul.f32 %v601, 0.6931472
        %v603 = vlog2.pop %v586
        %v604 = vmul.f32 %v603, 0.6931472
        %v605 = vlog2.pop %v587
        %v606 = vmul.f32 %v605, 0.6931472
        %v607 = vlog2.pop %v588
        %v608 = vmul.f32 %v607, 0.6931472
        %v609 = vmul.f32 %v590, 0.5
        %v610 = vmul.f32 %v592, 0.5
        %v611 = vmul.f32 %v594, 0.5
        %v612 = vmul.f32 %v596, 0.5
        %v613 = vsub.f32 %v602, %v609
        %v614 = vsub.f32 %v604, %v610
        %v615 = vsub.f32 %v606, %v611
        %v616 = vsub.f32 %v608, %v612
        %v617 = vmul.f32 %v597, 0.003968254
        %v618 = vmul.f32 %v598, 0.003968254
        %v619 = vmul.f32 %v599, 0.003968254
        %v620 = vmul.f32 %v600, 0.003968254
        %v621 = vsub.f32 0.008333334, %v617
        %v622 = vsub.f32 0.008333334, %v618
        %v623 = vsub.f32 0.008333334, %v619
        %v624 = vsub.f32 0.008333334, %v620
        %v625 = vmul.f32 %v597, %v621
        %v626 = vmul.f32 %v598, %v622
        %v627 = vmul.f32 %v599, %v623
        %v628 = vmul.f32 %v600, %v624
        %v629 = vsub.f32 0.083333336, %v625
        %v630 = vsub.f32 0.083333336, %v626
        %v631 = vsub.f32 0.083333336, %v627
        %v632 = vsub.f32 0.083333336, %v628
        %v633 = vmul.f32 %v597, %v629
        %v634 = vmul.f32 %v598, %v630
        %v635 = vmul.f32 %v599, %v631
        %v636 = vmul.f32 %v600, %v632
        %v637 = vsub.f32 %v613, %v633
        %v638 = vsub.f32 %v614, %v634
        %v639 = vsub.f32 %v615, %v635
        %v640 = vsub.f32 %v616, %v636
        %v641 = vsub.f32 %v637, %v581
        %v642 = vsub.f32 %v638, %v582
        %v643 = vsub.f32 %v639, %v583
        %v644 = vsub.f32 %v640, %v584
        %v645 = vmul.f32 %v464, %v232
        %v646 = vmul.f32 %v465, %v233
        %v647 = vmul.f32 %v466, %v234
        %v648 = vmul.f32 %v467, %v235
        %v649 = vsel %vm468, %v645, 0.0
        %v650 = vrot.slane %v649, 4
        %v651 = vadd.f32 %v649, %v650
        %v652 = vrot.slane %v651, 2
        %v653 = vadd.f32 %v651, %v652
        %v654 = vrot.slane %v653, 1
        %v655 = vadd.f32 %v653, %v654
        %v656 = vsel %vm468, %v646, 0.0
        %v657 = vrot.slane %v656, 4
        %v658 = vadd.f32 %v656, %v657
        %v659 = vrot.slane %v658, 2
        %v660 = vadd.f32 %v658, %v659
        %v661 = vrot.slane %v660, 1
        %v662 = vadd.f32 %v660, %v661
        %v663 = vsel %vm468, %v647, 0.0
        %v664 = vrot.slane %v663, 4
        %v665 = vadd.f32 %v663, %v664
        %v666 = vrot.slane %v665, 2
        %v667 = vadd.f32 %v665, %v666
        %v668 = vrot.slane %v667, 1
        %v669 = vadd.f32 %v667, %v668
        %v670 = vsel %vm468, %v648, 0.0
        %v671 = vrot.slane %v670, 4
        %v672 = vadd.f32 %v670, %v671
        %v673 = vrot.slane %v672, 2
        %v674 = vadd.f32 %v672, %v673
        %v675 = vrot.slane %v674, 1
        %v676 = vadd.f32 %v674, %v675
        %v677 = vsub.f32 %v641, %v655
        %v678 = vsub.f32 %v642, %v662
        %v679 = vsub.f32 %v643, %v669
        %v680 = vsub.f32 %v644, %v676
        %v681 = vmul.f32 %v201, %v232
        %v682 = vmul.f32 %v202, %v233
        %v683 = vmul.f32 %v203, %v234
        %v684 = vmul.f32 %v204, %v235
        %v685 = vsel %vm468, %v681, 0.0
        %v686 = vrot.slane %v685, 4
        %v687 = vadd.f32 %v685, %v686
        %v688 = vrot.slane %v687, 2
        %v689 = vadd.f32 %v687, %v688
        %v690 = vrot.slane %v689, 1
        %v691 = vadd.f32 %v689, %v690
        %v692 = vsel %vm468, %v682, 0.0
        %v693 = vrot.slane %v692, 4
        %v694 = vadd.f32 %v692, %v693
        %v695 = vrot.slane %v694, 2
        %v696 = vadd.f32 %v694, %v695
        %v697 = vrot.slane %v696, 1
        %v698 = vadd.f32 %v696, %v697
        %v699 = vsel %vm468, %v683, 0.0
        %v700 = vrot.slane %v699, 4
        %v701 = vadd.f32 %v699, %v700
        %v702 = vrot.slane %v701, 2
        %v703 = vadd.f32 %v701, %v702
        %v704 = vrot.slane %v703, 1
        %v705 = vadd.f32 %v703, %v704
        %v706 = vsel %vm468, %v684, 0.0
        %v707 = vrot.slane %v706, 4
        %v708 = vadd.f32 %v706, %v707
        %v709 = vrot.slane %v708, 2
        %v710 = vadd.f32 %v708, %v709
        %v711 = vrot.slane %v710, 1
        %v712 = vadd.f32 %v710, %v711
        %v713 = vsub.f32 %v475, %v691
        %v714 = vsub.f32 %v482, %v698
        %v715 = vsub.f32 %v489, %v705
        %v716 = vsub.f32 %v496, %v712
        %v717 = vadd.f32 %v713, 1.0
        %v718 = vadd.f32 %v714, 1.0
        %v719 = vadd.f32 %v715, 1.0
        %v720 = vadd.f32 %v716, 1.0
        %v721 = vrcp.pop %v717
        %v722 = vmul.f32 1.0, %v721
        %v723 = vrcp.pop %v718
        %v724 = vmul.f32 1.0, %v723
        %v725 = vrcp.pop %v719
        %v726 = vmul.f32 1.0, %v725
        %v727 = vrcp.pop %v720
        %v728 = vmul.f32 1.0, %v727
        %v729 = vadd.f32 %v717, 1.0
        %v730 = vadd.f32 %v718, 1.0
        %v731 = vadd.f32 %v719, 1.0
        %v732 = vadd.f32 %v720, 1.0
        %v733 = vmul.f32 %v717, %v729
        %v734 = vmul.f32 %v718, %v730
        %v735 = vmul.f32 %v719, %v731
        %v736 = vmul.f32 %v720, %v732
        %v737 = vrcp.pop %v729
        %v738 = vmul.f32 1.0, %v737
        %v739 = vrcp.pop %v730
        %v740 = vmul.f32 1.0, %v739
        %v741 = vrcp.pop %v731
        %v742 = vmul.f32 1.0, %v741
        %v743 = vrcp.pop %v732
        %v744 = vmul.f32 1.0, %v743
        %v745 = vadd.f32 %v722, %v738
        %v746 = vadd.f32 %v724, %v740
        %v747 = vadd.f32 %v726, %v742
        %v748 = vadd.f32 %v728, %v744
        %v749 = vadd.f32 %v729, 1.0
        %v750 = vadd.f32 %v730, 1.0
        %v751 = vadd.f32 %v731, 1.0
        %v752 = vadd.f32 %v732, 1.0
        %v753 = vmul.f32 %v733, %v749
        %v754 = vmul.f32 %v734, %v750
        %v755 = vmul.f32 %v735, %v751
        %v756 = vmul.f32 %v736, %v752
        %v757 = vrcp.pop %v749
        %v758 = vmul.f32 1.0, %v757
        %v759 = vrcp.pop %v750
        %v760 = vmul.f32 1.0, %v759
        %v761 = vrcp.pop %v751
        %v762 = vmul.f32 1.0, %v761
        %v763 = vrcp.pop %v752
        %v764 = vmul.f32 1.0, %v763
        %v765 = vadd.f32 %v745, %v758
        %v766 = vadd.f32 %v746, %v760
        %v767 = vadd.f32 %v747, %v762
        %v768 = vadd.f32 %v748, %v764
        %v769 = vadd.f32 %v749, 1.0
        %v770 = vadd.f32 %v750, 1.0
        %v771 = vadd.f32 %v751, 1.0
        %v772 = vadd.f32 %v752, 1.0
        %v773 = vmul.f32 %v753, %v769
        %v774 = vmul.f32 %v754, %v770
        %v775 = vmul.f32 %v755, %v771
        %v776 = vmul.f32 %v756, %v772
        %v777 = vrcp.pop %v769
        %v778 = vmul.f32 1.0, %v777
        %v779 = vrcp.pop %v770
        %v780 = vmul.f32 1.0, %v779
        %v781 = vrcp.pop %v771
        %v782 = vmul.f32 1.0, %v781
        %v783 = vrcp.pop %v772
        %v784 = vmul.f32 1.0, %v783
        %v785 = vadd.f32 %v765, %v778
        %v786 = vadd.f32 %v766, %v780
        %v787 = vadd.f32 %v767, %v782
        %v788 = vadd.f32 %v768, %v784
        %v789 = vadd.f32 %v769, 1.0
        %v790 = vadd.f32 %v770, 1.0
        %v791 = vadd.f32 %v771, 1.0
        %v792 = vadd.f32 %v772, 1.0
        %v793 = vmul.f32 %v773, %v789
        %v794 = vmul.f32 %v774, %v790
        %v795 = vmul.f32 %v775, %v791
        %v796 = vmul.f32 %v776, %v792
        %v797 = vrcp.pop %v789
        %v798 = vmul.f32 1.0, %v797
        %v799 = vrcp.pop %v790
        %v800 = vmul.f32 1.0, %v799
        %v801 = vrcp.pop %v791
        %v802 = vmul.f32 1.0, %v801
        %v803 = vrcp.pop %v792
        %v804 = vmul.f32 1.0, %v803
        %v805 = vadd.f32 %v785, %v798
        %v806 = vadd.f32 %v786, %v800
        %v807 = vadd.f32 %v787, %v802
        %v808 = vadd.f32 %v788, %v804
        %v809 = vadd.f32 %v789, 1.0
        %v810 = vadd.f32 %v790, 1.0
        %v811 = vadd.f32 %v791, 1.0
        %v812 = vadd.f32 %v792, 1.0
        %v813 = vmul.f32 %v793, %v809
        %v814 = vmul.f32 %v794, %v810
        %v815 = vmul.f32 %v795, %v811
        %v816 = vmul.f32 %v796, %v812
        %v817 = vrcp.pop %v809
        %v818 = vmul.f32 1.0, %v817
        %v819 = vrcp.pop %v810
        %v820 = vmul.f32 1.0, %v819
        %v821 = vrcp.pop %v811
        %v822 = vmul.f32 1.0, %v821
        %v823 = vrcp.pop %v812
        %v824 = vmul.f32 1.0, %v823
        %v825 = vadd.f32 %v805, %v818
        %v826 = vadd.f32 %v806, %v820
        %v827 = vadd.f32 %v807, %v822
        %v828 = vadd.f32 %v808, %v824
        %v829 = vadd.f32 %v809, 1.0
        %v830 = vadd.f32 %v810, 1.0
        %v831 = vadd.f32 %v811, 1.0
        %v832 = vadd.f32 %v812, 1.0
        %v833 = vlog2.pop %v829
        %v834 = vmul.f32 %v833, 0.6931472
        %v835 = vlog2.pop %v830
        %v836 = vmul.f32 %v835, 0.6931472
        %v837 = vlog2.pop %v831
        %v838 = vmul.f32 %v837, 0.6931472
        %v839 = vlog2.pop %v832
        %v840 = vmul.f32 %v839, 0.6931472
        %v841 = vrcp.pop %v829
        %v842 = vmul.f32 1.0, %v841
        %v843 = vrcp.pop %v830
        %v844 = vmul.f32 1.0, %v843
        %v845 = vrcp.pop %v831
        %v846 = vmul.f32 1.0, %v845
        %v847 = vrcp.pop %v832
        %v848 = vmul.f32 1.0, %v847
        %v849 = vmul.f32 %v842, %v842
        %v850 = vmul.f32 %v844, %v844
        %v851 = vmul.f32 %v846, %v846
        %v852 = vmul.f32 %v848, %v848
        %v853 = vmul.f32 %v849, -0.0005952381
        %v854 = vmul.f32 %v850, -0.0005952381
        %v855 = vmul.f32 %v851, -0.0005952381
        %v856 = vmul.f32 %v852, -0.0005952381
        %v857 = vadd.f32 %v853, 0.0007936508
        %v858 = vadd.f32 %v854, 0.0007936508
        %v859 = vadd.f32 %v855, 0.0007936508
        %v860 = vadd.f32 %v856, 0.0007936508
        %v861 = vmul.f32 %v849, %v857
        %v862 = vmul.f32 %v850, %v858
        %v863 = vmul.f32 %v851, %v859
        %v864 = vmul.f32 %v852, %v860
        %v865 = vadd.f32 %v861, -0.0027777778
        %v866 = vadd.f32 %v862, -0.0027777778
        %v867 = vadd.f32 %v863, -0.0027777778
        %v868 = vadd.f32 %v864, -0.0027777778
        %v869 = vmul.f32 %v849, %v865
        %v870 = vmul.f32 %v850, %v866
        %v871 = vmul.f32 %v851, %v867
        %v872 = vmul.f32 %v852, %v868
        %v873 = vadd.f32 %v869, 0.083333336
        %v874 = vadd.f32 %v870, 0.083333336
        %v875 = vadd.f32 %v871, 0.083333336
        %v876 = vadd.f32 %v872, 0.083333336
        %v877 = vmul.f32 %v842, %v873
        %v878 = vmul.f32 %v844, %v874
        %v879 = vmul.f32 %v846, %v875
        %v880 = vmul.f32 %v848, %v876
        %v881 = vsub.f32 %v829, 0.5
        %v882 = vsub.f32 %v830, 0.5
        %v883 = vsub.f32 %v831, 0.5
        %v884 = vsub.f32 %v832, 0.5
        %v885 = vmul.f32 %v881, %v834
        %v886 = vmul.f32 %v882, %v836
        %v887 = vmul.f32 %v883, %v838
        %v888 = vmul.f32 %v884, %v840
        %v889 = vsub.f32 %v885, %v829
        %v890 = vsub.f32 %v886, %v830
        %v891 = vsub.f32 %v887, %v831
        %v892 = vsub.f32 %v888, %v832
        %v893 = vadd.f32 %v889, 0.9189385
        %v894 = vadd.f32 %v890, 0.9189385
        %v895 = vadd.f32 %v891, 0.9189385
        %v896 = vadd.f32 %v892, 0.9189385
        %v897 = vadd.f32 %v893, %v877
        %v898 = vadd.f32 %v894, %v878
        %v899 = vadd.f32 %v895, %v879
        %v900 = vadd.f32 %v896, %v880
        %v901 = vlog2.pop %v813
        %v902 = vmul.f32 %v901, 0.6931472
        %v903 = vlog2.pop %v814
        %v904 = vmul.f32 %v903, 0.6931472
        %v905 = vlog2.pop %v815
        %v906 = vmul.f32 %v905, 0.6931472
        %v907 = vlog2.pop %v816
        %v908 = vmul.f32 %v907, 0.6931472
        %v909 = vsub.f32 %v897, %v902
        %v910 = vsub.f32 %v898, %v904
        %v911 = vsub.f32 %v899, %v906
        %v912 = vsub.f32 %v900, %v908
        %v913 = vmul.f32 %v842, 0.5
        %v914 = vmul.f32 %v844, 0.5
        %v915 = vmul.f32 %v846, 0.5
        %v916 = vmul.f32 %v848, 0.5
        %v917 = vsub.f32 %v834, %v913
        %v918 = vsub.f32 %v836, %v914
        %v919 = vsub.f32 %v838, %v915
        %v920 = vsub.f32 %v840, %v916
        %v921 = vmul.f32 %v849, 0.003968254
        %v922 = vmul.f32 %v850, 0.003968254
        %v923 = vmul.f32 %v851, 0.003968254
        %v924 = vmul.f32 %v852, 0.003968254
        %v925 = vsub.f32 0.008333334, %v921
        %v926 = vsub.f32 0.008333334, %v922
        %v927 = vsub.f32 0.008333334, %v923
        %v928 = vsub.f32 0.008333334, %v924
        %v929 = vmul.f32 %v849, %v925
        %v930 = vmul.f32 %v850, %v926
        %v931 = vmul.f32 %v851, %v927
        %v932 = vmul.f32 %v852, %v928
        %v933 = vsub.f32 0.083333336, %v929
        %v934 = vsub.f32 0.083333336, %v930
        %v935 = vsub.f32 0.083333336, %v931
        %v936 = vsub.f32 0.083333336, %v932
        %v937 = vmul.f32 %v849, %v933
        %v938 = vmul.f32 %v850, %v934
        %v939 = vmul.f32 %v851, %v935
        %v940 = vmul.f32 %v852, %v936
        %v941 = vsub.f32 %v917, %v937
        %v942 = vsub.f32 %v918, %v938
        %v943 = vsub.f32 %v919, %v939
        %v944 = vsub.f32 %v920, %v940
        %v945 = vsub.f32 %v941, %v825
        %v946 = vsub.f32 %v942, %v826
        %v947 = vsub.f32 %v943, %v827
        %v948 = vsub.f32 %v944, %v828
        %v949 = vsub.f32 %v909, 3.1780539
        %v950 = vsub.f32 %v910, 3.1780539
        %v951 = vsub.f32 %v911, 3.1780539
        %v952 = vsub.f32 %v912, 3.1780539
        %v953 = vmul.f32 %v236, %v428
        %v954 = vmul.f32 %v237, %v429
        %v955 = vmul.f32 %v238, %v430
        %v956 = vmul.f32 %v239, %v431
        %v957 = vsel %vm468, %v953, 0.0
        %v958 = vrot.slane %v957, 4
        %v959 = vadd.f32 %v957, %v958
        %v960 = vrot.slane %v959, 2
        %v961 = vadd.f32 %v959, %v960
        %v962 = vrot.slane %v961, 1
        %v963 = vadd.f32 %v961, %v962
        %v964 = vsel %vm468, %v954, 0.0
        %v965 = vrot.slane %v964, 4
        %v966 = vadd.f32 %v964, %v965
        %v967 = vrot.slane %v966, 2
        %v968 = vadd.f32 %v966, %v967
        %v969 = vrot.slane %v968, 1
        %v970 = vadd.f32 %v968, %v969
        %v971 = vsel %vm468, %v955, 0.0
        %v972 = vrot.slane %v971, 4
        %v973 = vadd.f32 %v971, %v972
        %v974 = vrot.slane %v973, 2
        %v975 = vadd.f32 %v973, %v974
        %v976 = vrot.slane %v975, 1
        %v977 = vadd.f32 %v975, %v976
        %v978 = vsel %vm468, %v956, 0.0
        %v979 = vrot.slane %v978, 4
        %v980 = vadd.f32 %v978, %v979
        %v981 = vrot.slane %v980, 2
        %v982 = vadd.f32 %v980, %v981
        %v983 = vrot.slane %v982, 1
        %v984 = vadd.f32 %v982, %v983
        %v985 = vsub.f32 %v949, %v963
        %v986 = vsub.f32 %v950, %v970
        %v987 = vsub.f32 %v951, %v977
        %v988 = vsub.f32 %v952, %v984
        %v989 = vsub.f32 %v201, 1.0
        %v990 = vsub.f32 %v202, 1.0
        %v991 = vsub.f32 %v203, 1.0
        %v992 = vsub.f32 %v204, 1.0
        %v993 = vmul.f32 %v236, %v989
        %v994 = vmul.f32 %v237, %v990
        %v995 = vmul.f32 %v238, %v991
        %v996 = vmul.f32 %v239, %v992
        %v997 = vsub.f32 %v464, %v945
        %v998 = vsub.f32 %v465, %v946
        %v999 = vsub.f32 %v466, %v947
        %v1000 = vsub.f32 %v467, %v948
        %v1001 = vmul.f32 %v993, %v997
        %v1002 = vmul.f32 %v994, %v998
        %v1003 = vmul.f32 %v995, %v999
        %v1004 = vmul.f32 %v996, %v1000
        %v1005 = vsel %vm468, %v1001, 0.0
        %v1006 = vrot.slane %v1005, 4
        %v1007 = vadd.f32 %v1005, %v1006
        %v1008 = vrot.slane %v1007, 2
        %v1009 = vadd.f32 %v1007, %v1008
        %v1010 = vrot.slane %v1009, 1
        %v1011 = vadd.f32 %v1009, %v1010
        %v1012 = vsel %vm468, %v1002, 0.0
        %v1013 = vrot.slane %v1012, 4
        %v1014 = vadd.f32 %v1012, %v1013
        %v1015 = vrot.slane %v1014, 2
        %v1016 = vadd.f32 %v1014, %v1015
        %v1017 = vrot.slane %v1016, 1
        %v1018 = vadd.f32 %v1016, %v1017
        %v1019 = vsel %vm468, %v1003, 0.0
        %v1020 = vrot.slane %v1019, 4
        %v1021 = vadd.f32 %v1019, %v1020
        %v1022 = vrot.slane %v1021, 2
        %v1023 = vadd.f32 %v1021, %v1022
        %v1024 = vrot.slane %v1023, 1
        %v1025 = vadd.f32 %v1023, %v1024
        %v1026 = vsel %vm468, %v1004, 0.0
        %v1027 = vrot.slane %v1026, 4
        %v1028 = vadd.f32 %v1026, %v1027
        %v1029 = vrot.slane %v1028, 2
        %v1030 = vadd.f32 %v1028, %v1029
        %v1031 = vrot.slane %v1030, 1
        %v1032 = vadd.f32 %v1030, %v1031
        %v1033 = vadd.f32 %v985, %v1011
        %v1034 = vadd.f32 %v986, %v1018
        %v1035 = vadd.f32 %v987, %v1025
        %v1036 = vadd.f32 %v988, %v1032
        %v1037 = vmul.f32 %v1033, 0.0
        %v1038 = vmul.f32 %v1034, 0.0
        %v1039 = vmul.f32 %v1035, 0.0
        %v1040 = vmul.f32 %v1036, 0.0
        %v1041 = vadd.f32 %v677, %v1037
        %v1042 = vadd.f32 %v678, %v1038
        %v1043 = vadd.f32 %v679, %v1039
        %v1044 = vadd.f32 %v680, %v1040
        %v1049 = vcombine.low %v1041, %v1042
        %v1050 = vcombine.low %v1043, %v1044
        %v1052 = vunpack.c.l.s4 1966171168
        %v1053 = vunpack.c.0.s8 %v1052
        %v1054 = vlaneseq
        %v1055 = vshrl.u32 %v1054, 7
        %v1056 = vsub.s32 %v1053, %v1055
        %v1057 = vrot.slane %v1049, %v1056
        %v1059 = vunpack.c.l.s4 1966171168
        %v1060 = vunpack.c.0.s8 %v1059
        %v1061 = vlaneseq
        %v1062 = vshrl.u32 %v1061, 7
        %v1063 = vsub.s32 %v1060, %v1062
        %v1064 = vrot.slane %v1050, %v1063
        %v1065 = vcombine.low %v1057, %v1064
        %v1067 = vunpack.c.l.s4 1966171168
        %v1068 = vunpack.c.0.s8 %v1067
        %v1069 = vlaneseq
        %v1070 = vshrl.u32 %v1069, 7
        %v1071 = vsub.s32 %v1068, %v1070
        %v1072 = vrot.slane %v1065, %v1071
        %v1074 = vlaneseq
        %vm1075 = vcmp.ge.s32.totalorder %v1074, 0
        %vm1076 = vcmp.lt.s32.totalorder %v1074, 512
        %vm1077 = vmand %vm1075, %vm1076
        %1078 = vst.msk [vmem:[%s197] sm:$0xf] %vm1077, %v1072
        %s1079 = sand.u32 %s82, 1
        %s1080 = scalar_lea.sflag [#allocation4], %s1079
        %s1081 = sand.u32 %s82, 1
        %s1082 = smul.addr %s1081, 4
        %s1083 = scalar_lea.vmem [#allocation7], %s1082
        // Predicated region
        $region37: #{tpu_custom_call.1} parent=27 // pred_check
          %p1084 = pneg %p92
        $region38: #{tpu_custom_call.1} parent=27 // pred_check_branch
          %1086 = sbr.rel (%p1084) target = $region40
        $region39: #{tpu_custom_call.1} parent=27 // pred_region
          %s1087 = smul.u32 4, %s22
          %s1089 = ssub.s32 64, 64
          %1090 = vsyncadd %s1080, %s1089
          %s1091 = smul.addr %s1087, 16
          %s1092 = scalar_lea.hbm %s2, %s1091
          %s1094 = sshll.u32 %s1083, 4
          %s1095 = int_to_ptr.vmem [resolvable:$true] %s1094
          %1097 = dma.vmem_to_hbm [thread:$0]  %s1095, 64, %s1092, %s1080
        $region40: #{tpu_custom_call.1} parent=27 // pred_fallthru
          _
      $region28: #{tpu_custom_call.1} parent=5 // pred_fallthru
        _
      %p1098 = scmp.le.s32.totalorder 2, %s17
      // Predicated region
      $region41: #{tpu_custom_call.1} parent=5 // pred_check
        %p1099 = pneg %p1098
      $region42: #{tpu_custom_call.1} parent=5 // pred_check_branch
        %1101 = sbr.rel (%p1099) target = $region44
      $region43: #{tpu_custom_call.1} parent=5 // pred_region
        %s1102 = ssub.s32 %s17, 2
        // Predicated region
        $region45: #{tpu_custom_call.1} parent=43 // pred_check
          %p1103 = pneg %p98
        $region46: #{tpu_custom_call.1} parent=43 // pred_check_branch
          %1105 = sbr.rel (%p1103) target = $region48
        $region47: #{tpu_custom_call.1} parent=43 // pred_region
          %s1106 = sand.u32 %s83, 1
          %s1107 = scalar_lea.sflag [#allocation4], %s1106
          %s1108 = sand.u32 %s83, 1
          %s1109 = smul.addr %s1108, 4
          %s1110 = scalar_lea.vmem [#allocation7], %s1109
          %1111 = dma.done %s1107, 64
        $region48: #{tpu_custom_call.1} parent=43 // pred_fallthru
          _
      $region44: #{tpu_custom_call.1} parent=5 // pred_fallthru
        _
    $region6: #{tpu_custom_call.1} parent=1 // loop_footer
      %s21 = sadd.s32 1, %s17
    $region7: #{tpu_custom_call.1} parent=1 // loop_footer_branch
      %16 = sbr.rel target = $region3
    $region8: #{tpu_custom_call.1} parent=1 // loop_exit
      _
    %1112 = vsyncpa [#allocation3], 1
    %s1113 = scalar_lea.sflag [#allocation3], 1
    %1114 = vsyncpa %s1113, 1
    %1115 = vsyncpa [#allocation6], 1
    %s1116 = scalar_lea.sflag [#allocation6], 1
    %1117 = vsyncpa %s1116, 1
    %1118 = vsyncpa [#allocation4], 1
    %s1119 = scalar_lea.sflag [#allocation4], 1
    %1120 = vsyncpa %s1119, 1

</llo_original>
